<compile_context>
chip_gen: v7x
topology: tpu7x:2x2x1
jax: 0.10.0
libtpu: 0.0.40
codegen_flags: <defaults>
</compile_context>

<pallas_src>
import functools

import jax
import jax.numpy as jnp
from jax.experimental import pallas as pl
from jax.experimental.pallas import tpu as pltpu

FEATURESIZE = 100
FEAT_PAD = 128                   # lane-dense padded feature width
HIDDEN = (20, 7, 4, 7)           # autoencoder bottleneck sizes
BN_EPS = 1e-5
NEG_BIG = -1e30                  # bias for padded logit columns -> softmax 0


def _round_up(n, m):
    return ((n + m - 1) // m) * m


def _purifier_kernel(x_ref,
                     w1, b1, w2, b2, w3, b3, w4, b4, w5, b5,
                     out_ref):
    """One (TB, 128) batch tile: 5 small matmuls + ReLUs + softmax."""
    x = x_ref[...]

    # Linear (+ folded BN) -> ReLU, four times.
    h = jnp.maximum(jnp.dot(x, w1[...], preferred_element_type=jnp.float32) + b1[...], 0.0)
    h = jnp.maximum(jnp.dot(h, w2[...], preferred_element_type=jnp.float32) + b2[...], 0.0)
    h = jnp.maximum(jnp.dot(h, w3[...], preferred_element_type=jnp.float32) + b3[...], 0.0)
    h = jnp.maximum(jnp.dot(h, w4[...], preferred_element_type=jnp.float32) + b4[...], 0.0)

    # Final projection to the (padded) feature size.
    logits = jnp.dot(h, w5[...], preferred_element_type=jnp.float32) + b5[...]

    # softmax over the feature (lane) axis; pad columns carry -1e30 bias -> 0.
    m = jnp.max(logits, axis=1, keepdims=True)
    e = jnp.exp(logits - m)
    denom = jnp.sum(e, axis=1, keepdims=True)
    r = pl.reciprocal(denom, approx=True)
    r = r * (2.0 - denom * r)          # one Newton step -> full fp32 accuracy
    out_ref[...] = (e * r).astype(out_ref.dtype)


def init_params(key):
    """Deterministic synthetic parameters (same shapes as nn.Module.__init__)."""
    dims = (FEATURESIZE,) + HIDDEN + (FEATURESIZE,)
    params = {}
    for i in range(5):
        d_in, d_out = dims[i], dims[i + 1]
        key, kw, kb = jax.random.split(key, 3)
        bound = 1.0 / jnp.sqrt(d_in)
        # stored as (in, out): kernel does x @ W
        params[f"w{i+1}"] = jax.random.uniform(
            kw, (d_in, d_out), jnp.float32, -bound, bound)
        params[f"b{i+1}"] = jax.random.uniform(
            kb, (1, d_out), jnp.float32, -bound, bound)
    # BatchNorm1d params for the first four linears (eval-mode running stats).
    for i, d in enumerate(HIDDEN, start=1):
        key, kg, kbeta, km, kv = jax.random.split(key, 5)
        params[f"bn{i}_gamma"] = 1.0 + 0.1 * jax.random.normal(kg, (1, d), jnp.float32)
        params[f"bn{i}_beta"] = 0.1 * jax.random.normal(kbeta, (1, d), jnp.float32)
        params[f"bn{i}_mean"] = 0.1 * jax.random.normal(km, (1, d), jnp.float32)
        params[f"bn{i}_var"] = jnp.abs(
            1.0 + 0.1 * jax.random.normal(kv, (1, d), jnp.float32))
    return params


def _fold_bn(params, i):
    scale = params[f"bn{i}_gamma"] / jnp.sqrt(params[f"bn{i}_var"] + BN_EPS)
    shift = params[f"bn{i}_beta"] - params[f"bn{i}_mean"] * scale
    return scale, shift


@functools.partial(jax.jit, static_argnames=("block_b",))
def purifier_forward(x, params, *, block_b=1024):
    """Pallas implementation of Purifier.forward(x, release='softmax')."""
    B = x.shape[0]
    TB = min(block_b, _round_up(B, 8))        # batch tile (multiple of 8)
    Bp = _round_up(B, TB)                     # padded batch

    # Fold eval-mode BatchNorm into the preceding Linear: y = (xW + b)*s + t
    #                                                        = x(W*s) + (b*s + t)
    ws, bs = [], []
    for i in range(1, 5):
        s, t = _fold_bn(params, i)
        ws.append(params[f"w{i}"] * s)
        bs.append(params[f"b{i}"] * s + t)

    # Pad feature axis 100 -> 128 on the boundary layers (lane-dense I/O).
    w1 = jnp.zeros((FEAT_PAD, HIDDEN[0]), jnp.float32).at[:FEATURESIZE, :].set(ws[0])
    w5 = jnp.zeros((HIDDEN[-1], FEAT_PAD), jnp.float32).at[:, :FEATURESIZE].set(params["w5"])
    b5 = jnp.full((1, FEAT_PAD), NEG_BIG, jnp.float32).at[:, :FEATURESIZE].set(params["b5"][0])

    xp = jnp.zeros((Bp, FEAT_PAD), jnp.float32).at[:B, :FEATURESIZE].set(
        x.astype(jnp.float32))

    weights = (w1, bs[0], ws[1], bs[1], ws[2], bs[2], ws[3], bs[3], w5, b5)

    def _const_spec(a):
        # full-array block, same block every grid step -> stays VMEM-resident
        return pl.BlockSpec(a.shape, lambda i: (0, 0))

    out = pl.pallas_call(
        _purifier_kernel,
        out_shape=jax.ShapeDtypeStruct((Bp, FEAT_PAD), jnp.float32),
        grid=(Bp // TB,),
        in_specs=[pl.BlockSpec((TB, FEAT_PAD), lambda i: (i, 0))]
                 + [_const_spec(a) for a in weights],
        out_specs=pl.BlockSpec((TB, FEAT_PAD), lambda i: (i, 0)),
        compiler_params=pltpu.CompilerParams(
            dimension_semantics=("parallel",)),
    )(xp, *weights)

    # Slice back to the caller's (B, 100) view. For a production pipeline the
    # padded (B, 128) layout could be kept end-to-end to avoid this copy.
    return out[:B, :FEATURESIZE]


def purifier_reference(x, params):
    """Pure-JAX reference (un-folded BN, exact division) for correctness."""
    h = x
    for i in range(1, 5):
        h = h @ params[f"w{i}"] + params[f"b{i}"]
        s, t = _fold_bn(params, i)
        h = jnp.maximum(h * s + t, 0.0)
    logits = h @ params["w5"] + params["b5"]
    return jax.nn.softmax(logits, axis=1)


if __name__ == "__main__":
    key = jax.random.PRNGKey(0)
    kp, kx = jax.random.split(key)
    params = init_params(kp)

    # Small batch of synthetic "posteriors" (the module takes (B, 100)).
    B = 8
    logits_in = jax.random.normal(kx, (B, FEATURESIZE), jnp.float32)
    x = jax.nn.softmax(logits_in, axis=1)

    out = jax.block_until_ready(purifier_forward(x, params))
    ref = purifier_reference(x, params)
    assert out.shape == (B, FEATURESIZE)
    assert jnp.allclose(out, ref, atol=1e-5, rtol=1e-5)
    assert jnp.allclose(jnp.sum(out, axis=1), 1.0, atol=1e-5)

    # Exercise the multi-step batch grid (B not a multiple of the tile).
    B2 = 40
    x2 = jax.nn.softmax(
        jax.random.normal(jax.random.PRNGKey(1), (B2, FEATURESIZE), jnp.float32),
        axis=1)
    out2 = jax.block_until_ready(purifier_forward(x2, params, block_b=16))
    ref2 = purifier_reference(x2, params)
    assert out2.shape == (B2, FEATURESIZE)
    assert jnp.allclose(out2, ref2, atol=1e-5, rtol=1e-5)

    # TODO(synk): useclamp / label_only_defense branches (data-dependent random
    # resampling of flagged rows) are not part of the default forward path and
    # are left out of the kernel.
    print("KERNEL_OK")
</pallas_src>

<mosaic_0001>
module attributes {stable_mosaic.version = 11 : i64} {
  func.func @_purifier_kernel(%arg0: i32, %arg1: memref<8x128xf32, #tpu.memory_space<vmem>>, %arg2: memref<128x20xf32, #tpu.memory_space<vmem>>, %arg3: memref<1x20xf32, #tpu.memory_space<vmem>>, %arg4: memref<20x7xf32, #tpu.memory_space<vmem>>, %arg5: memref<1x7xf32, #tpu.memory_space<vmem>>, %arg6: memref<7x4xf32, #tpu.memory_space<vmem>>, %arg7: memref<1x4xf32, #tpu.memory_space<vmem>>, %arg8: memref<4x7xf32, #tpu.memory_space<vmem>>, %arg9: memref<1x7xf32, #tpu.memory_space<vmem>>, %arg10: memref<7x128xf32, #tpu.memory_space<vmem>>, %arg11: memref<1x128xf32, #tpu.memory_space<vmem>>, %arg12: memref<8x128xf32, #tpu.memory_space<vmem>>) attributes {dimension_semantics = [#tpu.dimension_semantics<parallel>], iteration_bounds = array<i64: 1>, scalar_prefetch = 0 : i64, scratch_operands = 0 : i64, tpu.core_type = #tpu.core_type<tc>, window_params = [{transform_indices = @transform_0, window_bounds = array<i64: 8, 128>}, {pipeline_mode = #tpu.pipeline_mode<synchronous>, transform_indices = @transform_1, window_bounds = array<i64: 128, 20>}, {pipeline_mode = #tpu.pipeline_mode<synchronous>, transform_indices = @transform_2, window_bounds = array<i64: 1, 20>}, {pipeline_mode = #tpu.pipeline_mode<synchronous>, transform_indices = @transform_3, window_bounds = array<i64: 20, 7>}, {pipeline_mode = #tpu.pipeline_mode<synchronous>, transform_indices = @transform_4, window_bounds = array<i64: 1, 7>}, {pipeline_mode = #tpu.pipeline_mode<synchronous>, transform_indices = @transform_5, window_bounds = array<i64: 7, 4>}, {pipeline_mode = #tpu.pipeline_mode<synchronous>, transform_indices = @transform_6, window_bounds = array<i64: 1, 4>}, {pipeline_mode = #tpu.pipeline_mode<synchronous>, transform_indices = @transform_7, window_bounds = array<i64: 4, 7>}, {pipeline_mode = #tpu.pipeline_mode<synchronous>, transform_indices = @transform_8, window_bounds = array<i64: 1, 7>}, {pipeline_mode = #tpu.pipeline_mode<synchronous>, transform_indices = @transform_9, window_bounds = array<i64: 7, 128>}, {pipeline_mode = #tpu.pipeline_mode<synchronous>, transform_indices = @transform_10, window_bounds = array<i64: 1, 128>}, {transform_indices = @transform_11, window_bounds = array<i64: 8, 128>}]} {
    %c0 = arith.constant 0 : index
    %c0_0 = arith.constant 0 : index
    %0 = vector.load %arg1[%c0, %c0_0] : memref<8x128xf32, #tpu.memory_space<vmem>>, vector<8x128xf32>
    %c0_1 = arith.constant 0 : index
    %c0_2 = arith.constant 0 : index
    %1 = vector.load %arg2[%c0_1, %c0_2] : memref<128x20xf32, #tpu.memory_space<vmem>>, vector<128x20xf32>
    %cst = arith.constant dense<0.000000e+00> : vector<8x20xf32>
    %2 = tpu.matmul %0, %1, %cst {dimension_numbers = #tpu.dot_dimension_numbers<[1], [0], [0], [1], [0, 0, 1, 1], [], []>} : vector<8x128xf32>, vector<128x20xf32>, vector<8x20xf32> -> vector<8x20xf32>
    %c0_3 = arith.constant 0 : index
    %c0_4 = arith.constant 0 : index
    %3 = vector.load %arg3[%c0_3, %c0_4] : memref<1x20xf32, #tpu.memory_space<vmem>>, vector<1x20xf32>
    %4 = vector.broadcast %3 : vector<1x20xf32> to vector<8x20xf32>
    %5 = arith.addf %2, %4 : vector<8x20xf32>
    %cst_5 = arith.constant 0.000000e+00 : f32
    %6 = vector.broadcast %cst_5 : f32 to vector<8x20xf32>
    %7 = arith.maximumf %5, %6 : vector<8x20xf32>
    %c0_6 = arith.constant 0 : index
    %c0_7 = arith.constant 0 : index
    %8 = vector.load %arg4[%c0_6, %c0_7] : memref<20x7xf32, #tpu.memory_space<vmem>>, vector<20x7xf32>
    %cst_8 = arith.constant dense<0.000000e+00> : vector<8x7xf32>
    %9 = tpu.matmul %7, %8, %cst_8 {dimension_numbers = #tpu.dot_dimension_numbers<[1], [0], [0], [1], [0, 0, 1, 1], [], []>} : vector<8x20xf32>, vector<20x7xf32>, vector<8x7xf32> -> vector<8x7xf32>
    %c0_9 = arith.constant 0 : index
    %c0_10 = arith.constant 0 : index
    %10 = vector.load %arg5[%c0_9, %c0_10] : memref<1x7xf32, #tpu.memory_space<vmem>>, vector<1x7xf32>
    %11 = vector.broadcast %10 : vector<1x7xf32> to vector<8x7xf32>
    %12 = arith.addf %9, %11 : vector<8x7xf32>
    %cst_11 = arith.constant 0.000000e+00 : f32
    %13 = vector.broadcast %cst_11 : f32 to vector<8x7xf32>
    %14 = arith.maximumf %12, %13 : vector<8x7xf32>
    %c0_12 = arith.constant 0 : index
    %c0_13 = arith.constant 0 : index
    %15 = vector.load %arg6[%c0_12, %c0_13] : memref<7x4xf32, #tpu.memory_space<vmem>>, vector<7x4xf32>
    %cst_14 = arith.constant dense<0.000000e+00> : vector<8x4xf32>
    %16 = tpu.matmul %14, %15, %cst_14 {dimension_numbers = #tpu.dot_dimension_numbers<[1], [0], [0], [1], [0, 0, 1, 1], [], []>} : vector<8x7xf32>, vector<7x4xf32>, vector<8x4xf32> -> vector<8x4xf32>
    %c0_15 = arith.constant 0 : index
    %c0_16 = arith.constant 0 : index
    %17 = vector.load %arg7[%c0_15, %c0_16] : memref<1x4xf32, #tpu.memory_space<vmem>>, vector<1x4xf32>
    %18 = vector.broadcast %17 : vector<1x4xf32> to vector<8x4xf32>
    %19 = arith.addf %16, %18 : vector<8x4xf32>
    %cst_17 = arith.constant 0.000000e+00 : f32
    %20 = vector.broadcast %cst_17 : f32 to vector<8x4xf32>
    %21 = arith.maximumf %19, %20 : vector<8x4xf32>
    %c0_18 = arith.constant 0 : index
    %c0_19 = arith.constant 0 : index
    %22 = vector.load %arg8[%c0_18, %c0_19] : memref<4x7xf32, #tpu.memory_space<vmem>>, vector<4x7xf32>
    %cst_20 = arith.constant dense<0.000000e+00> : vector<8x7xf32>
    %23 = tpu.matmul %21, %22, %cst_20 {dimension_numbers = #tpu.dot_dimension_numbers<[1], [0], [0], [1], [0, 0, 1, 1], [], []>} : vector<8x4xf32>, vector<4x7xf32>, vector<8x7xf32> -> vector<8x7xf32>
    %c0_21 = arith.constant 0 : index
    %c0_22 = arith.constant 0 : index
    %24 = vector.load %arg9[%c0_21, %c0_22] : memref<1x7xf32, #tpu.memory_space<vmem>>, vector<1x7xf32>
    %25 = vector.broadcast %24 : vector<1x7xf32> to vector<8x7xf32>
    %26 = arith.addf %23, %25 : vector<8x7xf32>
    %cst_23 = arith.constant 0.000000e+00 : f32
    %27 = vector.broadcast %cst_23 : f32 to vector<8x7xf32>
    %28 = arith.maximumf %26, %27 : vector<8x7xf32>
    %c0_24 = arith.constant 0 : index
    %c0_25 = arith.constant 0 : index
    %29 = vector.load %arg10[%c0_24, %c0_25] : memref<7x128xf32, #tpu.memory_space<vmem>>, vector<7x128xf32>
    %cst_26 = arith.constant dense<0.000000e+00> : vector<8x128xf32>
    %30 = tpu.matmul %28, %29, %cst_26 {dimension_numbers = #tpu.dot_dimension_numbers<[1], [0], [0], [1], [0, 0, 1, 1], [], []>} : vector<8x7xf32>, vector<7x128xf32>, vector<8x128xf32> -> vector<8x128xf32>
    %c0_27 = arith.constant 0 : index
    %c0_28 = arith.constant 0 : index
    %31 = vector.load %arg11[%c0_27, %c0_28] : memref<1x128xf32, #tpu.memory_space<vmem>>, vector<1x128xf32>
    %32 = vector.broadcast %31 : vector<1x128xf32> to vector<8x128xf32>
    %33 = arith.addf %30, %32 : vector<8x128xf32>
    %cst_29 = arith.constant dense<0xFF800000> : vector<8xf32>
    %34 = vector.multi_reduction <maximumf>, %33, %cst_29 [1] : vector<8x128xf32> to vector<8xf32>
    %35 = vector.shape_cast %34 : vector<8xf32> to vector<8x1xf32>
    %36 = vector.broadcast %35 : vector<8x1xf32> to vector<8x128xf32>
    %37 = arith.subf %33, %36 : vector<8x128xf32>
    %38 = math.exp %37 : vector<8x128xf32>
    %cst_30 = arith.constant dense<0.000000e+00> : vector<8xf32>
    %39 = vector.multi_reduction <add>, %38, %cst_30 [1] : vector<8x128xf32> to vector<8xf32>
    %40 = vector.shape_cast %39 : vector<8xf32> to vector<8x1xf32>
    %41 = tpu.reciprocal %40 {approx = true} : vector<8x1xf32> -> vector<8x1xf32>
    %42 = arith.mulf %40, %41 : vector<8x1xf32>
    %cst_31 = arith.constant 2.000000e+00 : f32
    %43 = vector.broadcast %cst_31 : f32 to vector<8x1xf32>
    %44 = arith.subf %43, %42 : vector<8x1xf32>
    %45 = arith.mulf %41, %44 : vector<8x1xf32>
    %46 = vector.broadcast %45 : vector<8x1xf32> to vector<8x128xf32>
    %47 = arith.mulf %38, %46 : vector<8x128xf32>
    %c0_32 = arith.constant 0 : index
    %c0_33 = arith.constant 0 : index
    %48 = vector.load %arg12[%c0_32, %c0_33] : memref<8x128xf32, #tpu.memory_space<vmem>>, vector<8x128xf32>
    tpu.vector_store %arg12[%c0_32, %c0_33], %47 {strides = array<i32>} : memref<8x128xf32, #tpu.memory_space<vmem>>, vector<8x128xf32>,
    return
  }
  func.func @transform_0(%arg0: i32) -> (i32, i32) {
    %c0_i32 = arith.constant 0 : i32
    %c0_i32_0 = arith.constant 0 : i32
    return %arg0, %c0_i32 : i32, i32
  }
  func.func @transform_1(%arg0: i32) -> (i32, i32) {
    %c0_i32 = arith.constant 0 : i32
    %c0_i32_0 = arith.constant 0 : i32
    %c0_i32_1 = arith.constant 0 : i32
    return %c0_i32, %c0_i32_0 : i32, i32
  }
  func.func @transform_2(%arg0: i32) -> (i32, i32) {
    %c0_i32 = arith.constant 0 : i32
    %c0_i32_0 = arith.constant 0 : i32
    %c0_i32_1 = arith.constant 0 : i32
    return %c0_i32, %c0_i32_0 : i32, i32
  }
  func.func @transform_3(%arg0: i32) -> (i32, i32) {
    %c0_i32 = arith.constant 0 : i32
    %c0_i32_0 = arith.constant 0 : i32
    %c0_i32_1 = arith.constant 0 : i32
    return %c0_i32, %c0_i32_0 : i32, i32
  }
  func.func @transform_4(%arg0: i32) -> (i32, i32) {
    %c0_i32 = arith.constant 0 : i32
    %c0_i32_0 = arith.constant 0 : i32
    %c0_i32_1 = arith.constant 0 : i32
    return %c0_i32, %c0_i32_0 : i32, i32
  }
  func.func @transform_5(%arg0: i32) -> (i32, i32) {
    %c0_i32 = arith.constant 0 : i32
    %c0_i32_0 = arith.constant 0 : i32
    %c0_i32_1 = arith.constant 0 : i32
    return %c0_i32, %c0_i32_0 : i32, i32
  }
  func.func @transform_6(%arg0: i32) -> (i32, i32) {
    %c0_i32 = arith.constant 0 : i32
    %c0_i32_0 = arith.constant 0 : i32
    %c0_i32_1 = arith.constant 0 : i32
    return %c0_i32, %c0_i32_0 : i32, i32
  }
  func.func @transform_7(%arg0: i32) -> (i32, i32) {
    %c0_i32 = arith.constant 0 : i32
    %c0_i32_0 = arith.constant 0 : i32
    %c0_i32_1 = arith.constant 0 : i32
    return %c0_i32, %c0_i32_0 : i32, i32
  }
  func.func @transform_8(%arg0: i32) -> (i32, i32) {
    %c0_i32 = arith.constant 0 : i32
    %c0_i32_0 = arith.constant 0 : i32
    %c0_i32_1 = arith.constant 0 : i32
    return %c0_i32, %c0_i32_0 : i32, i32
  }
  func.func @transform_9(%arg0: i32) -> (i32, i32) {
    %c0_i32 = arith.constant 0 : i32
    %c0_i32_0 = arith.constant 0 : i32
    %c0_i32_1 = arith.constant 0 : i32
    return %c0_i32, %c0_i32_0 : i32, i32
  }
  func.func @transform_10(%arg0: i32) -> (i32, i32) {
    %c0_i32 = arith.constant 0 : i32
    %c0_i32_0 = arith.constant 0 : i32
    %c0_i32_1 = arith.constant 0 : i32
    return %c0_i32, %c0_i32_0 : i32, i32
  }
  func.func @transform_11(%arg0: i32) -> (i32, i32) {
    %c0_i32 = arith.constant 0 : i32
    %c0_i32_0 = arith.constant 0 : i32
    return %arg0, %c0_i32 : i32, i32
  }
}

</mosaic_0001>

<llo_original>
// kernel: purifier_forward.1
$region0: #{purifier_forward.1}
  #allocation0 [shape = 'u32[]', space=smem, size = 0x4, offset = 0x4, fixed_abs, tag = 'smem constant byte address 0x4 - core index']
  #allocation1 [shape = 'u32[144,128]{1,0:T(1,128)}', space=vmem, size = 0x12000, scoped, tag = 'internal scratch']
  %s0 = inlined_call_operand.vmem [shape: f32[8,128], index: 0, kind: input, shape index: {}]
  %s1 = inlined_call_operand.vmem [shape: f32[128,20], index: 1, kind: input, shape index: {}]
  %s2 = inlined_call_operand.vmem [shape: f32[1,20], index: 2, kind: input, shape index: {}]
  %s3 = inlined_call_operand.vmem [shape: f32[20,7], index: 3, kind: input, shape index: {}]
  %s4 = inlined_call_operand.vmem [shape: f32[1,7], index: 4, kind: input, shape index: {}]
  %s5 = inlined_call_operand.vmem [shape: f32[7,4], index: 5, kind: input, shape index: {}]
  %s6 = inlined_call_operand.vmem [shape: f32[1,4], index: 6, kind: input, shape index: {}]
  %s7 = inlined_call_operand.vmem [shape: f32[4,7], index: 7, kind: input, shape index: {}]
  %s8 = inlined_call_operand.vmem [shape: f32[1,7], index: 8, kind: input, shape index: {}]
  %s9 = inlined_call_operand.vmem [shape: f32[7,128], index: 9, kind: input, shape index: {}]
  %s10 = inlined_call_operand.vmem [shape: f32[1,128], index: 10, kind: input, shape index: {}]
  %s11 = inlined_call_operand.hbm [shape: f32[8,128], index: 11, kind: output, shape index: {}]
  %s12 = sld [smem:[#allocation0]]
  $region54: #{purifier_forward.1} parent=0
    _
  %s14 = ssub.s32 1, %s12
  %s15 = scalar_select 0, %s14, %s12
  $region1: #{purifier_forward.1} parent=0
    #allocation2 [shape = 'u8[4096]{0}', space=vmem, size = 0x1000, scoped, tag = 'output window, operand 0, single buffered']
    #allocation3 [shape = 's32[1]{0}', space=sflag, size = 0x4, scoped, tag = 'scoped memory for purifier_forward.1']
    %16 = vsyncpa [#allocation3], 0
    // Predicated region
    $region2: #{purifier_forward.1} parent=1 // pred_check
      _
    $region3: #{purifier_forward.1} parent=1 // pred_check_branch
      %18 = sbr.rel (0) target = $region5
    $region4: #{purifier_forward.1} parent=1 // pred_region
      _
    $region5: #{purifier_forward.1} parent=1 // pred_fallthru
      _
    // Predicated region
    $region6: #{purifier_forward.1} parent=1 // pred_check
      _
    $region7: #{purifier_forward.1} parent=1 // pred_check_branch
      %20 = sbr.rel (0) target = $region9
    $region8: #{purifier_forward.1} parent=1 // pred_region
      _
    $region9: #{purifier_forward.1} parent=1 // pred_fallthru
      _
    // Predicated region
    $region10: #{purifier_forward.1} parent=1 // pred_check
      _
    $region11: #{purifier_forward.1} parent=1 // pred_check_branch
      %22 = sbr.rel (0) target = $region13
    $region12: #{purifier_forward.1} parent=1 // pred_region
      _
    $region13: #{purifier_forward.1} parent=1 // pred_fallthru
      _
    // Predicated region
    $region14: #{purifier_forward.1} parent=1 // pred_check
      _
    $region15: #{purifier_forward.1} parent=1 // pred_check_branch
      %24 = sbr.rel (0) target = $region17
    $region16: #{purifier_forward.1} parent=1 // pred_region
      _
    $region17: #{purifier_forward.1} parent=1 // pred_fallthru
      _
    // Predicated region
    $region18: #{purifier_forward.1} parent=1 // pred_check
      _
    $region19: #{purifier_forward.1} parent=1 // pred_check_branch
      %26 = sbr.rel (0) target = $region21
    $region20: #{purifier_forward.1} parent=1 // pred_region
      _
    $region21: #{purifier_forward.1} parent=1 // pred_fallthru
      _
    // Predicated region
    $region22: #{purifier_forward.1} parent=1 // pred_check
      _
    $region23: #{purifier_forward.1} parent=1 // pred_check_branch
      %28 = sbr.rel (0) target = $region25
    $region24: #{purifier_forward.1} parent=1 // pred_region
      _
    $region25: #{purifier_forward.1} parent=1 // pred_fallthru
      _
    // Predicated region
    $region26: #{purifier_forward.1} parent=1 // pred_check
      _
    $region27: #{purifier_forward.1} parent=1 // pred_check_branch
      %30 = sbr.rel (0) target = $region29
    $region28: #{purifier_forward.1} parent=1 // pred_region
      _
    $region29: #{purifier_forward.1} parent=1 // pred_fallthru
      _
    // Predicated region
    $region30: #{purifier_forward.1} parent=1 // pred_check
      _
    $region31: #{purifier_forward.1} parent=1 // pred_check_branch
      %32 = sbr.rel (0) target = $region33
    $region32: #{purifier_forward.1} parent=1 // pred_region
      _
    $region33: #{purifier_forward.1} parent=1 // pred_fallthru
      _
    // Predicated region
    $region34: #{purifier_forward.1} parent=1 // pred_check
      _
    $region35: #{purifier_forward.1} parent=1 // pred_check_branch
      %34 = sbr.rel (0) target = $region37
    $region36: #{purifier_forward.1} parent=1 // pred_region
      _
    $region37: #{purifier_forward.1} parent=1 // pred_fallthru
      _
    // Predicated region
    $region38: #{purifier_forward.1} parent=1 // pred_check
      _
    $region39: #{purifier_forward.1} parent=1 // pred_check_branch
      %36 = sbr.rel (0) target = $region41
    $region40: #{purifier_forward.1} parent=1 // pred_region
      _
    $region41: #{purifier_forward.1} parent=1 // pred_fallthru
      _
    // Predicated region
    $region42: #{purifier_forward.1} parent=1 // pred_check
      _
    $region43: #{purifier_forward.1} parent=1 // pred_check_branch
      %38 = sbr.rel (0) target = $region45
    $region44: #{purifier_forward.1} parent=1 // pred_region
      _
    $region45: #{purifier_forward.1} parent=1 // pred_fallthru
      _
    %v39 = vld [vmem:[%s0] sm:$0xff]
    %v40 = vld [vmem:[%s1] sm:$0xff]
    %v41 = vld [vmem:[%s1 + $0x8] sm:$0xff]
    %v42 = vld [vmem:[%s1 + $0x10] sm:$0xff]
    %v43 = vld [vmem:[%s1 + $0x18] sm:$0xff]
    %v44 = vld [vmem:[%s1 + $0x20] sm:$0xff]
    %v45 = vld [vmem:[%s1 + $0x28] sm:$0xff]
    %v46 = vld [vmem:[%s1 + $0x30] sm:$0xff]
    %v47 = vld [vmem:[%s1 + $0x38] sm:$0xff]
    %v48 = vld [vmem:[%s1 + $0x40] sm:$0xff]
    %v49 = vld [vmem:[%s1 + $0x48] sm:$0xff]
    %v50 = vld [vmem:[%s1 + $0x50] sm:$0xff]
    %v51 = vld [vmem:[%s1 + $0x58] sm:$0xff]
    %v52 = vld [vmem:[%s1 + $0x60] sm:$0xff]
    %v53 = vld [vmem:[%s1 + $0x68] sm:$0xff]
    %v54 = vld [vmem:[%s1 + $0x70] sm:$0xff]
    %v55 = vld [vmem:[%s1 + $0x78] sm:$0xff]
    %v56 = vld [vmem:[%s2] sm:$0x1]
    %v58 = vlaneseq
    %v59 = vshrl.u32 %v58, 7
    %v60 = vsub.s32 0, %v59
    %v61 = vrot.slane %v56, %v60
    %63 = vmatprep.subr.mxu0 0.0
    %64 = vmatpush1.msra.mxu0 %v40
    %65 = vmatprep.subr.mxu0 0.0
    %66 = vmatpush1.msra.mxu0 %v41
    %67 = vmatprep.subr.mxu0 0.0
    %68 = vmatpush1.msra.mxu0 %v42
    %69 = vmatprep.subr.mxu0 0.0
    %70 = vmatpush1.msra.mxu0 %v43
    %71 = vmatprep.subr.mxu0 0.0
    %72 = vmatpush1.msra.mxu0 %v44
    %73 = vmatprep.subr.mxu0 0.0
    %74 = vmatpush1.msra.mxu0 %v45
    %75 = vmatprep.subr.mxu0 0.0
    %76 = vmatpush1.msra.mxu0 %v46
    %77 = vmatprep.subr.mxu0 0.0
    %78 = vmatpush1.msra.mxu0 %v47
    %79 = vmatprep.subr.mxu0 0.0
    %80 = vmatpush1.msra.mxu0 %v48
    %81 = vmatprep.subr.mxu0 0.0
    %82 = vmatpush1.msra.mxu0 %v49
    %83 = vmatprep.subr.mxu0 0.0
    %84 = vmatpush1.msra.mxu0 %v50
    %85 = vmatprep.subr.mxu0 0.0
    %86 = vmatpush1.msra.mxu0 %v51
    %87 = vmatprep.subr.mxu0 0.0
    %88 = vmatpush1.msra.mxu0 %v52
    %89 = vmatprep.subr.mxu0 0.0
    %90 = vmatpush1.msra.mxu0 %v53
    %91 = vmatprep.subr.mxu0 0.0
    %92 = vmatpush1.msra.mxu0 %v54
    %93 = vmatprep.subr.mxu0 0.0
    %94 = vmatpush1.msra.mxu0 %v55
    %95 = vmatprep.subr.mxu0 0.0
    %96 = vmatpush1.msra.mxu0 0.0
    %97 = vmatprep.subr.mxu0 0.0
    %98 = vmatpush1.msra.mxu0 0.0
    %99 = vmatprep.subr.mxu0 0.0
    %100 = vmatpush1.msra.mxu0 0.0
    %101 = vmatprep.subr.mxu0 0.0
    %102 = vmatpush1.msra.mxu0 0.0
    %103 = vmatprep.subr.mxu0 0.0
    %104 = vmatpush1.msra.mxu0 0.0
    %105 = vmatprep.subr.mxu0 0.0
    %106 = vmatpush1.msra.mxu0 0.0
    %107 = vmatprep.subr.mxu0 0.0
    %108 = vmatpush1.msra.mxu0 0.0
    %109 = vmatprep.subr.mxu0 0.0
    %110 = vmatpush1.msra.mxu0 0.0
    %111 = vmatprep.subr.mxu0 0.0
    %112 = vmatpush1.msra.mxu0 0.0
    %113 = vmatprep.subr.mxu0 0.0
    %114 = vmatpush1.msra.mxu0 0.0
    %115 = vmatprep.subr.mxu0 0.0
    %116 = vmatpush1.msra.mxu0 0.0
    %117 = vmatprep.subr.mxu0 0.0
    %118 = vmatpush1.msra.mxu0 0.0
    %119 = vmatprep.subr.mxu0 0.0
    %120 = vmatpush1.msra.mxu0 0.0
    %121 = vmatprep.subr.mxu0 0.0
    %122 = vmatpush1.msra.mxu0 0.0
    %123 = vmatprep.subr.mxu0 0.0
    %124 = vmatpush1.msra.mxu0 0.0
    %125 = vmatprep.subr.mxu0 0.0
    %126 = vmatpush1.msra.mxu0 0.0
    %127 = vmatprep.mubr.f32.mxu0 0.0
    %128 = vmatmul.mubr.f32.gmra.mrb[0].mxu0 %v39
    %v129 = vpop.f32.mrb[0].mxu0
    %v130 = vadd.f32 %v61, %v129
    %v131 = vpop.f32.mrb[0].mxu0
    %132 = vdwg.mxu0
    %v133 = vmax.f32 %v130, 0.0
    %v134 = vld [vmem:[%s3] sm:$0xff]
    %v135 = vld [vmem:[%s3 + $0x8] sm:$0xff]
    %v136 = vld [vmem:[%s3 + $0x10] sm:$0xf]
    %v137 = vld [vmem:[%s4] sm:$0x1]
    %v139 = vlaneseq
    %v140 = vshrl.u32 %v139, 7
    %v141 = vsub.s32 0, %v140
    %v142 = vrot.slane %v137, %v141
    %vm144 = vcmask 162816
    %v146 = vsel %vm144, %v133, 0
    %vm148 = vcmask 1043456
    %v150 = vsel %vm148, %v136, 0
    %152 = vmatprep.subr.mxu0 0.0
    %153 = vmatpush1.msra.mxu0 %v134
    %154 = vmatprep.subr.mxu0 0.0
    %155 = vmatpush1.msra.mxu0 %v135
    %156 = vmatprep.subr.mxu0 0.0
    %157 = vmatpush1.msra.mxu0 %v150
    %158 = vmatprep.subr.mxu0 0.0
    %159 = vmatpush1.msra.mxu0 0.0
    %160 = vmatprep.subr.mxu0 0.0
    %161 = vmatpush1.msra.mxu0 0.0
    %162 = vmatprep.subr.mxu0 0.0
    %163 = vmatpush1.msra.mxu0 0.0
    %164 = vmatprep.subr.mxu0 0.0
    %165 = vmatpush1.msra.mxu0 0.0
    %166 = vmatprep.subr.mxu0 0.0
    %167 = vmatpush1.msra.mxu0 0.0
    %168 = vmatprep.subr.mxu0 0.0
    %169 = vmatpush1.msra.mxu0 0.0
    %170 = vmatprep.subr.mxu0 0.0
    %171 = vmatpush1.msra.mxu0 0.0
    %172 = vmatprep.subr.mxu0 0.0
    %173 = vmatpush1.msra.mxu0 0.0
    %174 = vmatprep.subr.mxu0 0.0
    %175 = vmatpush1.msra.mxu0 0.0
    %176 = vmatprep.subr.mxu0 0.0
    %177 = vmatpush1.msra.mxu0 0.0
    %178 = vmatprep.subr.mxu0 0.0
    %179 = vmatpush1.msra.mxu0 0.0
    %180 = vmatprep.subr.mxu0 0.0
    %181 = vmatpush1.msra.mxu0 0.0
    %182 = vmatprep.subr.mxu0 0.0
    %183 = vmatpush1.msra.mxu0 0.0
    %184 = vmatprep.subr.mxu0 0.0
    %185 = vmatpush1.msra.mxu0 0.0
    %186 = vmatprep.subr.mxu0 0.0
    %187 = vmatpush1.msra.mxu0 0.0
    %188 = vmatprep.subr.mxu0 0.0
    %189 = vmatpush1.msra.mxu0 0.0
    %190 = vmatprep.subr.mxu0 0.0
    %191 = vmatpush1.msra.mxu0 0.0
    %192 = vmatprep.subr.mxu0 0.0
    %193 = vmatpush1.msra.mxu0 0.0
    %194 = vmatprep.subr.mxu0 0.0
    %195 = vmatpush1.msra.mxu0 0.0
    %196 = vmatprep.subr.mxu0 0.0
    %197 = vmatpush1.msra.mxu0 0.0
    %198 = vmatprep.subr.mxu0 0.0
    %199 = vmatpush1.msra.mxu0 0.0
    %200 = vmatprep.subr.mxu0 0.0
    %201 = vmatpush1.msra.mxu0 0.0
    %202 = vmatprep.subr.mxu0 0.0
    %203 = vmatpush1.msra.mxu0 0.0
    %204 = vmatprep.subr.mxu0 0.0
    %205 = vmatpush1.msra.mxu0 0.0
    %206 = vmatprep.subr.mxu0 0.0
    %207 = vmatpush1.msra.mxu0 0.0
    %208 = vmatprep.subr.mxu0 0.0
    %209 = vmatpush1.msra.mxu0 0.0
    %210 = vmatprep.subr.mxu0 0.0
    %211 = vmatpush1.msra.mxu0 0.0
    %212 = vmatprep.subr.mxu0 0.0
    %213 = vmatpush1.msra.mxu0 0.0
    %214 = vmatprep.subr.mxu0 0.0
    %215 = vmatpush1.msra.mxu0 0.0
    %216 = vmatprep.mubr.f32.mxu0 0.0
    %217 = vmatmul.mubr.f32.gmra.mrb[0].mxu0 %v146
    %v218 = vpop.f32.mrb[0].mxu0
    %v219 = vadd.f32 %v142, %v218
    %v220 = vpop.f32.mrb[0].mxu0
    %221 = vdwg.mxu0
    %v222 = vmax.f32 %v219, 0.0
    %v223 = vld [vmem:[%s5] sm:$0x7f]
    %v224 = vld [vmem:[%s6] sm:$0x1]
    %v226 = vlaneseq
    %v227 = vshrl.u32 %v226, 7
    %v228 = vsub.s32 0, %v227
    %v229 = vrot.slane %v224, %v228
    %vm231 = vcmask 56320
    %v233 = vsel %vm231, %v222, 0
    %vm235 = vcmask 1046528
    %v237 = vsel %vm235, %v223, 0
    %239 = vmatprep.subr.mxu0 0.0
    %240 = vmatpush1.msra.mxu0 %v237
    %241 = vmatprep.subr.mxu0 0.0
    %242 = vmatpush1.msra.mxu0 0.0
    %243 = vmatprep.subr.mxu0 0.0
    %244 = vmatpush1.msra.mxu0 0.0
    %245 = vmatprep.subr.mxu0 0.0
    %246 = vmatpush1.msra.mxu0 0.0
    %247 = vmatprep.subr.mxu0 0.0
    %248 = vmatpush1.msra.mxu0 0.0
    %249 = vmatprep.subr.mxu0 0.0
    %250 = vmatpush1.msra.mxu0 0.0
    %251 = vmatprep.subr.mxu0 0.0
    %252 = vmatpush1.msra.mxu0 0.0
    %253 = vmatprep.subr.mxu0 0.0
    %254 = vmatpush1.msra.mxu0 0.0
    %255 = vmatprep.subr.mxu0 0.0
    %256 = vmatpush1.msra.mxu0 0.0
    %257 = vmatprep.subr.mxu0 0.0
    %258 = vmatpush1.msra.mxu0 0.0
    %259 = vmatprep.subr.mxu0 0.0
    %260 = vmatpush1.msra.mxu0 0.0
    %261 = vmatprep.subr.mxu0 0.0
    %262 = vmatpush1.msra.mxu0 0.0
    %263 = vmatprep.subr.mxu0 0.0
    %264 = vmatpush1.msra.mxu0 0.0
    %265 = vmatprep.subr.mxu0 0.0
    %266 = vmatpush1.msra.mxu0 0.0
    %267 = vmatprep.subr.mxu0 0.0
    %268 = vmatpush1.msra.mxu0 0.0
    %269 = vmatprep.subr.mxu0 0.0
    %270 = vmatpush1.msra.mxu0 0.0
    %271 = vmatprep.subr.mxu0 0.0
    %272 = vmatpush1.msra.mxu0 0.0
    %273 = vmatprep.subr.mxu0 0.0
    %274 = vmatpush1.msra.mxu0 0.0
    %275 = vmatprep.subr.mxu0 0.0
    %276 = vmatpush1.msra.mxu0 0.0
    %277 = vmatprep.subr.mxu0 0.0
    %278 = vmatpush1.msra.mxu0 0.0
    %279 = vmatprep.subr.mxu0 0.0
    %280 = vmatpush1.msra.mxu0 0.0
    %281 = vmatprep.subr.mxu0 0.0
    %282 = vmatpush1.msra.mxu0 0.0
    %283 = vmatprep.subr.mxu0 0.0
    %284 = vmatpush1.msra.mxu0 0.0
    %285 = vmatprep.subr.mxu0 0.0
    %286 = vmatpush1.msra.mxu0 0.0
    %287 = vmatprep.subr.mxu0 0.0
    %288 = vmatpush1.msra.mxu0 0.0
    %289 = vmatprep.subr.mxu0 0.0
    %290 = vmatpush1.msra.mxu0 0.0
    %291 = vmatprep.subr.mxu0 0.0
    %292 = vmatpush1.msra.mxu0 0.0
    %293 = vmatprep.subr.mxu0 0.0
    %294 = vmatpush1.msra.mxu0 0.0
    %295 = vmatprep.subr.mxu0 0.0
    %296 = vmatpush1.msra.mxu0 0.0
    %297 = vmatprep.subr.mxu0 0.0
    %298 = vmatpush1.msra.mxu0 0.0
    %299 = vmatprep.subr.mxu0 0.0
    %300 = vmatpush1.msra.mxu0 0.0
    %301 = vmatprep.subr.mxu0 0.0
    %302 = vmatpush1.msra.mxu0 0.0
    %303 = vmatprep.mubr.f32.mxu0 0.0
    %304 = vmatmul.mubr.f32.gmra.mrb[0].mxu0 %v233
    %v305 = vpop.f32.mrb[0].mxu0
    %v306 = vadd.f32 %v229, %v305
    %v307 = vpop.f32.mrb[0].mxu0
    %308 = vdwg.mxu0
    %v309 = vmax.f32 %v306, 0.0
    %v310 = vld [vmem:[%s7] sm:$0xf]
    %v311 = vld [vmem:[%s8] sm:$0x1]
    %v313 = vlaneseq
    %v314 = vshrl.u32 %v313, 7
    %v315 = vsub.s32 0, %v314
    %v316 = vrot.slane %v311, %v315
    %vm318 = vcmask 31744
    %v320 = vsel %vm318, %v309, 0
    %v323 = vsel %vm148, %v310, 0
    %325 = vmatprep.subr.mxu0 0.0
    %326 = vmatpush1.msra.mxu0 %v323
    %327 = vmatprep.subr.mxu0 0.0
    %328 = vmatpush1.msra.mxu0 0.0
    %329 = vmatprep.subr.mxu0 0.0
    %330 = vmatpush1.msra.mxu0 0.0
    %331 = vmatprep.subr.mxu0 0.0
    %332 = vmatpush1.msra.mxu0 0.0
    %333 = vmatprep.subr.mxu0 0.0
    %334 = vmatpush1.msra.mxu0 0.0
    %335 = vmatprep.subr.mxu0 0.0
    %336 = vmatpush1.msra.mxu0 0.0
    %337 = vmatprep.subr.mxu0 0.0
    %338 = vmatpush1.msra.mxu0 0.0
    %339 = vmatprep.subr.mxu0 0.0
    %340 = vmatpush1.msra.mxu0 0.0
    %341 = vmatprep.subr.mxu0 0.0
    %342 = vmatpush1.msra.mxu0 0.0
    %343 = vmatprep.subr.mxu0 0.0
    %344 = vmatpush1.msra.mxu0 0.0
    %345 = vmatprep.subr.mxu0 0.0
    %346 = vmatpush1.msra.mxu0 0.0
    %347 = vmatprep.subr.mxu0 0.0
    %348 = vmatpush1.msra.mxu0 0.0
    %349 = vmatprep.subr.mxu0 0.0
    %350 = vmatpush1.msra.mxu0 0.0
    %351 = vmatprep.subr.mxu0 0.0
    %352 = vmatpush1.msra.mxu0 0.0
    %353 = vmatprep.subr.mxu0 0.0
    %354 = vmatpush1.msra.mxu0 0.0
    %355 = vmatprep.subr.mxu0 0.0
    %356 = vmatpush1.msra.mxu0 0.0
    %357 = vmatprep.subr.mxu0 0.0
    %358 = vmatpush1.msra.mxu0 0.0
    %359 = vmatprep.subr.mxu0 0.0
    %360 = vmatpush1.msra.mxu0 0.0
    %361 = vmatprep.subr.mxu0 0.0
    %362 = vmatpush1.msra.mxu0 0.0
    %363 = vmatprep.subr.mxu0 0.0
    %364 = vmatpush1.msra.mxu0 0.0
    %365 = vmatprep.subr.mxu0 0.0
    %366 = vmatpush1.msra.mxu0 0.0
    %367 = vmatprep.subr.mxu0 0.0
    %368 = vmatpush1.msra.mxu0 0.0
    %369 = vmatprep.subr.mxu0 0.0
    %370 = vmatpush1.msra.mxu0 0.0
    %371 = vmatprep.subr.mxu0 0.0
    %372 = vmatpush1.msra.mxu0 0.0
    %373 = vmatprep.subr.mxu0 0.0
    %374 = vmatpush1.msra.mxu0 0.0
    %375 = vmatprep.subr.mxu0 0.0
    %376 = vmatpush1.msra.mxu0 0.0
    %377 = vmatprep.subr.mxu0 0.0
    %378 = vmatpush1.msra.mxu0 0.0
    %379 = vmatprep.subr.mxu0 0.0
    %380 = vmatpush1.msra.mxu0 0.0
    %381 = vmatprep.subr.mxu0 0.0
    %382 = vmatpush1.msra.mxu0 0.0
    %383 = vmatprep.subr.mxu0 0.0
    %384 = vmatpush1.msra.mxu0 0.0
    %385 = vmatprep.subr.mxu0 0.0
    %386 = vmatpush1.msra.mxu0 0.0
    %387 = vmatprep.subr.mxu0 0.0
    %388 = vmatpush1.msra.mxu0 0.0
    %389 = vmatprep.mubr.f32.mxu0 0.0
    %390 = vmatmul.mubr.f32.gmra.mrb[0].mxu0 %v320
    %v391 = vpop.f32.mrb[0].mxu0
    %v392 = vadd.f32 %v316, %v391
    %v393 = vpop.f32.mrb[0].mxu0
    %394 = vdwg.mxu0
    %v395 = vmax.f32 %v392, 0.0
    %v396 = vld [vmem:[%s9] sm:$0x7f]
    %v397 = vld [vmem:[%s10] sm:$0x1]
    %v399 = vlaneseq
    %v400 = vshrl.u32 %v399, 7
    %v401 = vsub.s32 0, %v400
    %v402 = vrot.slane %v397, %v401
    %v405 = vsel %vm231, %v395, 0
    %v408 = vsel %vm235, %v396, 0
    %410 = vmatprep.subr.mxu0 0.0
    %411 = vmatpush1.msra.mxu0 %v408
    %412 = vmatprep.subr.mxu0 0.0
    %413 = vmatpush1.msra.mxu0 0.0
    %414 = vmatprep.subr.mxu0 0.0
    %415 = vmatpush1.msra.mxu0 0.0
    %416 = vmatprep.subr.mxu0 0.0
    %417 = vmatpush1.msra.mxu0 0.0
    %418 = vmatprep.subr.mxu0 0.0
    %419 = vmatpush1.msra.mxu0 0.0
    %420 = vmatprep.subr.mxu0 0.0
    %421 = vmatpush1.msra.mxu0 0.0
    %422 = vmatprep.subr.mxu0 0.0
    %423 = vmatpush1.msra.mxu0 0.0
    %424 = vmatprep.subr.mxu0 0.0
    %425 = vmatpush1.msra.mxu0 0.0
    %426 = vmatprep.subr.mxu0 0.0
    %427 = vmatpush1.msra.mxu0 0.0
    %428 = vmatprep.subr.mxu0 0.0
    %429 = vmatpush1.msra.mxu0 0.0
    %430 = vmatprep.subr.mxu0 0.0
    %431 = vmatpush1.msra.mxu0 0.0
    %432 = vmatprep.subr.mxu0 0.0
    %433 = vmatpush1.msra.mxu0 0.0
    %434 = vmatprep.subr.mxu0 0.0
    %435 = vmatpush1.msra.mxu0 0.0
    %436 = vmatprep.subr.mxu0 0.0
    %437 = vmatpush1.msra.mxu0 0.0
    %438 = vmatprep.subr.mxu0 0.0
    %439 = vmatpush1.msra.mxu0 0.0
    %440 = vmatprep.subr.mxu0 0.0
    %441 = vmatpush1.msra.mxu0 0.0
    %442 = vmatprep.subr.mxu0 0.0
    %443 = vmatpush1.msra.mxu0 0.0
    %444 = vmatprep.subr.mxu0 0.0
    %445 = vmatpush1.msra.mxu0 0.0
    %446 = vmatprep.subr.mxu0 0.0
    %447 = vmatpush1.msra.mxu0 0.0
    %448 = vmatprep.subr.mxu0 0.0
    %449 = vmatpush1.msra.mxu0 0.0
    %450 = vmatprep.subr.mxu0 0.0
    %451 = vmatpush1.msra.mxu0 0.0
    %452 = vmatprep.subr.mxu0 0.0
    %453 = vmatpush1.msra.mxu0 0.0
    %454 = vmatprep.subr.mxu0 0.0
    %455 = vmatpush1.msra.mxu0 0.0
    %456 = vmatprep.subr.mxu0 0.0
    %457 = vmatpush1.msra.mxu0 0.0
    %458 = vmatprep.subr.mxu0 0.0
    %459 = vmatpush1.msra.mxu0 0.0
    %460 = vmatprep.subr.mxu0 0.0
    %461 = vmatpush1.msra.mxu0 0.0
    %462 = vmatprep.subr.mxu0 0.0
    %463 = vmatpush1.msra.mxu0 0.0
    %464 = vmatprep.subr.mxu0 0.0
    %465 = vmatpush1.msra.mxu0 0.0
    %466 = vmatprep.subr.mxu0 0.0
    %467 = vmatpush1.msra.mxu0 0.0
    %468 = vmatprep.subr.mxu0 0.0
    %469 = vmatpush1.msra.mxu0 0.0
    %470 = vmatprep.subr.mxu0 0.0
    %471 = vmatpush1.msra.mxu0 0.0
    %472 = vmatprep.subr.mxu0 0.0
    %473 = vmatpush1.msra.mxu0 0.0
    %474 = vmatprep.mubr.f32.mxu0 0.0
    %475 = vmatmul.mubr.f32.gmra.mrb[0].mxu0 %v405
    %v476 = vpop.f32.mrb[0].mxu0
    %v477 = vadd.f32 %v402, %v476
    %v478 = vpop.f32.mrb[0].mxu0
    %479 = vdwg.mxu0
    %480 = vmax.xlane.f32.xlu0 %v477
    %v481 = vpop.xlane.xlu0 %480
    %v482 = vsub.f32 %v477, %v481
    %v483 = vmul.f32 %v482, 1.442695
    %v484 = vpow.pop %v483
    %485 = vadd.xlane.f32.xlu0 %v484
    %v486 = vpop.xlane.xlu0 %485
    %v487 = vrcp.pop %v486
    %v488 = vmul.f32 %v486, %v487
    %v489 = vsub.f32 2.0, %v488
    %v490 = vmul.f32 %v487, %v489
    %v491 = vmul.f32 %v484, %v490
    %492 = vst [vmem:[#allocation2] sm:$0xff] %v491
    // Predicated region
    $region46: #{purifier_forward.1} parent=1 // pred_check
      _
    $region47: #{purifier_forward.1} parent=1 // pred_check_branch
      %494 = sbr.rel (0) target = $region49
    $region48: #{purifier_forward.1} parent=1 // pred_region
      %s496 = ssub.s32 128, 128
      %497 = vsyncadd [#allocation3], %s496
      %s499 = sshll.u32 [#allocation2], 4
      %s500 = int_to_ptr.vmem [resolvable:$true] %s499
      %502 = dma.vmem_to_hbm [thread:$0]  %s500, 128, %s11, [#allocation3]
    $region49: #{purifier_forward.1} parent=1 // pred_fallthru
      _
    // Predicated region
    $region50: #{purifier_forward.1} parent=1 // pred_check
      _
    $region51: #{purifier_forward.1} parent=1 // pred_check_branch
      %504 = sbr.rel (0) target = $region53
    $region52: #{purifier_forward.1} parent=1 // pred_region
      %505 = dma.done [#allocation3], 128
    $region53: #{purifier_forward.1} parent=1 // pred_fallthru
      _
    %506 = vsyncpa [#allocation3], 1

</llo_original>
